<compile_context>
chip_gen: v5e
topology: v5e:2x2
jax: 0.10.0
libtpu: 0.0.40
codegen_flags: <defaults>
</compile_context>

<pallas_src>
import functools

import jax
import jax.numpy as jnp
from jax.experimental import pallas as pl
from jax.experimental.pallas import tpu as pltpu


# ----------------------------- Pallas kernels ------------------------------


def _first_layer(x, w, b, t, dp):
    """h = x @ w + b with the tiny-K contraction done on the VPU."""
    k_dim = x.shape[1]
    # Hoisted single broadcast of the bias (not re-broadcast per loop iter).
    acc = jnp.broadcast_to(b, (t, dp)).astype(jnp.float32)
    if k_dim <= 32:
        # K is tiny (2 * pack_factor): a K<<128 MXU matmul would waste >95% of
        # the systolic array; a handful of broadcast FMAs on the VPU is free.
        for k in range(k_dim):
            acc = acc + x[:, k:k + 1] * w[k:k + 1, :]
    else:
        acc = acc + jnp.dot(x, w, preferred_element_type=jnp.float32)
    return acc


def _linear_kernel(x_ref, w_ref, b_ref, o_ref):
    # x: [T, 2P], w: [2P, Dp], b: [1, Dp]  ->  o: [T, Dp]
    x = x_ref[...]
    w = w_ref[...]
    t = x.shape[0]
    dp = w.shape[1]
    o_ref[...] = _first_layer(x, w, b_ref[...], t, dp).astype(o_ref.dtype)


def _mlp_kernel(x_ref, w1_ref, b1_ref, w2_ref, b2_ref, o_ref):
    # x: [T, 2P], w1: [2P, Dp], b1: [1, Dp], w2: [Dp, Dp], b2: [1, Dp]
    x = x_ref[...]
    w1 = w1_ref[...]
    t = x.shape[0]
    dp = w1.shape[1]
    h = _first_layer(x, w1, b1_ref[...], t, dp)
    h = jnp.maximum(h, 0.0)  # ReLU
    # Second layer on the MXU (K = Dp >= 128 in the packed case).  For very
    # large emb_dim on v6e/v7x, casting h/w2 to bf16 (keeping
    # preferred_element_type=f32) would double MXU throughput; kept f32 here
    # since the kernel is HBM-store-bound and f32 matches the reference.
    y = jnp.dot(h, w2_ref[...], preferred_element_type=jnp.float32) + b2_ref[...]
    o_ref[...] = y.astype(o_ref.dtype)


# ------------------------------ Wrapper helpers ------------------------------

_LANE = 128
_TILE_OUT_BYTES = 4 * 1024 * 1024      # budget for a single output buffer
_MAX_TILE_ROWS = 2048                  # packed rows per grid step (mult of 8)


def _round_up(x, m):
    return (x + m - 1) // m * m


def _pack_factor(emb_dim):
    if emb_dim < _LANE and _LANE % emb_dim == 0:
        return _LANE // emb_dim
    return 1


def _block_diag(w, p):
    # kron(eye(P), w): block-diagonal weight so P logical rows are computed in
    # one lane-dense physical row.  Identity when P == 1.
    if p == 1:
        return w
    return jnp.kron(jnp.eye(p, dtype=w.dtype), w)


def _tile_bias(b, p):
    return jnp.tile(b, p).reshape(1, -1)


def _choose_tile_rows(rows, dp):
    # Largest tile that keeps a double-buffered output well under the scoped
    # VMEM limit on all generations (v5e 16 MiB default, v7x 64 MiB physical).
    by_vmem = max(8, (_TILE_OUT_BYTES // (dp * 4)) // 8 * 8)
    tile = min(_MAX_TILE_ROWS, by_vmem, _round_up(rows, 8))
    return max(8, (tile // 8) * 8)


def _gps_pallas_call(kernel, x2, params, emb_dim, flops):
    """x2: [N, 2] f32 coordinates; params: packed (block-diag / lane-tiled)
    weight & bias arrays. Returns [N, emb_dim] f32."""
    n = x2.shape[0]
    p = _pack_factor(emb_dim)
    dp = p * emb_dim
    rows = pl.cdiv(n, p)
    tile_rows = _choose_tile_rows(rows, dp)
    rows_pad = _round_up(rows, tile_rows)
    n_pad = rows_pad * p

    # Pad rows (Pallas does not bounds-check VMEM refs) and pack P logical
    # rows per physical row: a free row-major reshape, same bytes.
    x_packed = jnp.pad(x2, ((0, n_pad - n), (0, 0))).reshape(rows_pad, 2 * p)

    grid = (rows_pad // tile_rows,)
    in_specs = [pl.BlockSpec((tile_rows, 2 * p), lambda i: (i, 0))]
    for arr in params:  # weights/biases: constant block -> resident in VMEM
        in_specs.append(pl.BlockSpec(arr.shape, lambda i: (0, 0)))
    out_specs = pl.BlockSpec((tile_rows, dp), lambda i: (i, 0))

    bytes_accessed = n * 2 * 4 + n * emb_dim * 4 + sum(
        int(a.size) * 4 for a in params)

    out = pl.pallas_call(
        kernel,
        out_shape=jax.ShapeDtypeStruct((rows_pad, dp), jnp.float32),
        grid=grid,
        in_specs=in_specs,
        out_specs=out_specs,
        compiler_params=pltpu.CompilerParams(
            dimension_semantics=("parallel",),          # 2 TCs on v7x
            vmem_limit_bytes=32 * 1024 * 1024,
        ),
        cost_estimate=pl.CostEstimate(
            flops=int(flops),
            transcendentals=0,
            bytes_accessed=int(bytes_accessed)),
    )(x_packed, *params)

    # Unpack: (rows_pad, P*emb_dim) -> (n_pad, emb_dim), drop padded rows.
    return out.reshape(n_pad, emb_dim)[:n]


# --------------------------------- Wrappers ----------------------------------


@functools.partial(jax.jit, static_argnames=("emb_dim",))
def gps_embedding_linear(coordinates, w, b, *, emb_dim):
    """'linear' config: Linear(2, emb_dim).  w is [2, emb_dim] (PyTorch w.T)."""
    lead = coordinates.shape[:-1]
    x = coordinates.reshape(-1, 2).astype(jnp.float32)
    n = x.shape[0]
    p = _pack_factor(emb_dim)
    params = (_block_diag(w.astype(jnp.float32), p),
              _tile_bias(b.astype(jnp.float32), p))
    flops = n * emb_dim * 5
    out = _gps_pallas_call(_linear_kernel, x, params, emb_dim, flops)
    return out.reshape(*lead, emb_dim)


@functools.partial(jax.jit, static_argnames=("emb_dim",))
def gps_embedding_nonlinear(coordinates, w1, b1, w2, b2, *, emb_dim):
    """'non-linear' config: Linear(2, D) -> ReLU -> Linear(D, D)."""
    lead = coordinates.shape[:-1]
    x = coordinates.reshape(-1, 2).astype(jnp.float32)
    n = x.shape[0]
    p = _pack_factor(emb_dim)
    params = (_block_diag(w1.astype(jnp.float32), p),
              _tile_bias(b1.astype(jnp.float32), p),
              _block_diag(w2.astype(jnp.float32), p),
              _tile_bias(b2.astype(jnp.float32), p))
    flops = n * emb_dim * (7 + 2 * emb_dim)
    out = _gps_pallas_call(_mlp_kernel, x, params, emb_dim, flops)
    return out.reshape(*lead, emb_dim)


# --------------------------- Parameter creation -----------------------------


def _init_linear_params(key, fan_in, fan_out):
    # Mimics PyTorch nn.Linear default init: U(-1/sqrt(fan_in), 1/sqrt(fan_in)).
    kw, kb = jax.random.split(key)
    bound = 1.0 / jnp.sqrt(jnp.float32(fan_in))
    # stored as [in, out] (transposed vs. PyTorch weight [out, in])
    w = jax.random.uniform(kw, (fan_in, fan_out), jnp.float32, -bound, bound)
    b = jax.random.uniform(kb, (fan_out,), jnp.float32, -bound, bound)
    return w, b


# ------------------------------- References ----------------------------------


def _ref_linear(x, w, b):
    return x @ w + b


def _ref_nonlinear(x, w1, b1, w2, b2):
    h = jnp.maximum(x @ w1 + b1, 0.0)
    return h @ w2 + b2


# --------------------------------- Main --------------------------------------


if __name__ == "__main__":
    key = jax.random.PRNGKey(0)
    batch, seq, emb_dim = 2, 8, 32

    k_x, k_l, k_1, k_2, k_r = jax.random.split(key, 5)
    coordinates = jax.random.normal(k_x, (batch, seq, 2), jnp.float32)

    # --- 'linear' config ---
    w, b = _init_linear_params(k_l, 2, emb_dim)
    out_lin = jax.block_until_ready(
        gps_embedding_linear(coordinates, w, b, emb_dim=emb_dim))
    ref_lin = _ref_linear(coordinates.reshape(-1, 2), w, b).reshape(
        batch, seq, emb_dim)
    assert out_lin.shape == (batch, seq, emb_dim)
    assert jnp.allclose(out_lin, ref_lin, atol=1e-4, rtol=1e-4), (
        float(jnp.max(jnp.abs(out_lin - ref_lin))))

    # --- 'non-linear' config ---
    w1, b1 = _init_linear_params(k_1, 2, emb_dim)
    w2, b2 = _init_linear_params(k_2, emb_dim, emb_dim)
    out_mlp = jax.block_until_ready(
        gps_embedding_nonlinear(coordinates, w1, b1, w2, b2, emb_dim=emb_dim))
    ref_mlp = _ref_nonlinear(coordinates.reshape(-1, 2), w1, b1, w2, b2).reshape(
        batch, seq, emb_dim)
    assert out_mlp.shape == (batch, seq, emb_dim)
    assert jnp.allclose(out_mlp, ref_mlp, atol=1e-4, rtol=1e-4), (
        float(jnp.max(jnp.abs(out_mlp - ref_mlp))))

    # --- ragged row count (N = 15, exercises the pad/pack remainder path) ---
    coords_rag = jax.random.normal(k_r, (3, 5, 2), jnp.float32)
    out_rag = jax.block_until_ready(
        gps_embedding_nonlinear(coords_rag, w1, b1, w2, b2, emb_dim=emb_dim))
    ref_rag = _ref_nonlinear(coords_rag.reshape(-1, 2), w1, b1, w2, b2).reshape(
        3, 5, emb_dim)
    assert out_rag.shape == (3, 5, emb_dim)
    assert jnp.allclose(out_rag, ref_rag, atol=1e-4, rtol=1e-4), (
        float(jnp.max(jnp.abs(out_rag - ref_rag))))

    print("KERNEL_OK")
</pallas_src>

<mosaic_0001>
module attributes {stable_mosaic.version = 11 : i64} {
  func.func @_linear_kernel(%arg0: i32, %arg1: memref<8x8xf32, #tpu.memory_space<vmem>>, %arg2: memref<8x128xf32, #tpu.memory_space<vmem>>, %arg3: memref<1x128xf32, #tpu.memory_space<vmem>>, %arg4: memref<8x128xf32, #tpu.memory_space<vmem>>) attributes {dimension_semantics = [#tpu.dimension_semantics<parallel>], iteration_bounds = array<i64: 1>, scalar_prefetch = 0 : i64, scratch_operands = 0 : i64, tpu.core_type = #tpu.core_type<tc>, window_params = [{transform_indices = @transform_0, window_bounds = array<i64: 8, 8>}, {pipeline_mode = #tpu.pipeline_mode<synchronous>, transform_indices = @transform_1, window_bounds = array<i64: 8, 128>}, {pipeline_mode = #tpu.pipeline_mode<synchronous>, transform_indices = @transform_2, window_bounds = array<i64: 1, 128>}, {transform_indices = @transform_3, window_bounds = array<i64: 8, 128>}]} {
    %c0 = arith.constant 0 : index
    %c0_0 = arith.constant 0 : index
    %0 = vector.load %arg1[%c0, %c0_0] : memref<8x8xf32, #tpu.memory_space<vmem>>, vector<8x8xf32>
    %c0_1 = arith.constant 0 : index
    %c0_2 = arith.constant 0 : index
    %1 = vector.load %arg2[%c0_1, %c0_2] : memref<8x128xf32, #tpu.memory_space<vmem>>, vector<8x128xf32>
    %c0_3 = arith.constant 0 : index
    %c0_4 = arith.constant 0 : index
    %2 = vector.load %arg3[%c0_3, %c0_4] : memref<1x128xf32, #tpu.memory_space<vmem>>, vector<1x128xf32>
    %3 = vector.shape_cast %2 : vector<1x128xf32> to vector<1x128xf32>
    %4 = vector.broadcast %3 : vector<1x128xf32> to vector<8x128xf32>
    %5 = vector.extract_strided_slice %0 {offsets = [0, 0], sizes = [8, 1], strides = [1, 1]} : vector<8x8xf32> to vector<8x1xf32>
    %6 = vector.extract_strided_slice %1 {offsets = [0, 0], sizes = [1, 128], strides = [1, 1]} : vector<8x128xf32> to vector<1x128xf32>
    %7 = vector.broadcast %5 : vector<8x1xf32> to vector<8x128xf32>
    %8 = vector.broadcast %6 : vector<1x128xf32> to vector<8x128xf32>
    %9 = arith.mulf %7, %8 : vector<8x128xf32>
    %10 = arith.addf %4, %9 : vector<8x128xf32>
    %11 = vector.extract_strided_slice %0 {offsets = [0, 1], sizes = [8, 1], strides = [1, 1]} : vector<8x8xf32> to vector<8x1xf32>
    %12 = vector.extract_strided_slice %1 {offsets = [1, 0], sizes = [1, 128], strides = [1, 1]} : vector<8x128xf32> to vector<1x128xf32>
    %13 = vector.broadcast %11 : vector<8x1xf32> to vector<8x128xf32>
    %14 = vector.broadcast %12 : vector<1x128xf32> to vector<8x128xf32>
    %15 = arith.mulf %13, %14 : vector<8x128xf32>
    %16 = arith.addf %10, %15 : vector<8x128xf32>
    %17 = vector.extract_strided_slice %0 {offsets = [0, 2], sizes = [8, 1], strides = [1, 1]} : vector<8x8xf32> to vector<8x1xf32>
    %18 = vector.extract_strided_slice %1 {offsets = [2, 0], sizes = [1, 128], strides = [1, 1]} : vector<8x128xf32> to vector<1x128xf32>
    %19 = vector.broadcast %17 : vector<8x1xf32> to vector<8x128xf32>
    %20 = vector.broadcast %18 : vector<1x128xf32> to vector<8x128xf32>
    %21 = arith.mulf %19, %20 : vector<8x128xf32>
    %22 = arith.addf %16, %21 : vector<8x128xf32>
    %23 = vector.extract_strided_slice %0 {offsets = [0, 3], sizes = [8, 1], strides = [1, 1]} : vector<8x8xf32> to vector<8x1xf32>
    %24 = vector.extract_strided_slice %1 {offsets = [3, 0], sizes = [1, 128], strides = [1, 1]} : vector<8x128xf32> to vector<1x128xf32>
    %25 = vector.broadcast %23 : vector<8x1xf32> to vector<8x128xf32>
    %26 = vector.broadcast %24 : vector<1x128xf32> to vector<8x128xf32>
    %27 = arith.mulf %25, %26 : vector<8x128xf32>
    %28 = arith.addf %22, %27 : vector<8x128xf32>
    %29 = vector.extract_strided_slice %0 {offsets = [0, 4], sizes = [8, 1], strides = [1, 1]} : vector<8x8xf32> to vector<8x1xf32>
    %30 = vector.extract_strided_slice %1 {offsets = [4, 0], sizes = [1, 128], strides = [1, 1]} : vector<8x128xf32> to vector<1x128xf32>
    %31 = vector.broadcast %29 : vector<8x1xf32> to vector<8x128xf32>
    %32 = vector.broadcast %30 : vector<1x128xf32> to vector<8x128xf32>
    %33 = arith.mulf %31, %32 : vector<8x128xf32>
    %34 = arith.addf %28, %33 : vector<8x128xf32>
    %35 = vector.extract_strided_slice %0 {offsets = [0, 5], sizes = [8, 1], strides = [1, 1]} : vector<8x8xf32> to vector<8x1xf32>
    %36 = vector.extract_strided_slice %1 {offsets = [5, 0], sizes = [1, 128], strides = [1, 1]} : vector<8x128xf32> to vector<1x128xf32>
    %37 = vector.broadcast %35 : vector<8x1xf32> to vector<8x128xf32>
    %38 = vector.broadcast %36 : vector<1x128xf32> to vector<8x128xf32>
    %39 = arith.mulf %37, %38 : vector<8x128xf32>
    %40 = arith.addf %34, %39 : vector<8x128xf32>
    %41 = vector.extract_strided_slice %0 {offsets = [0, 6], sizes = [8, 1], strides = [1, 1]} : vector<8x8xf32> to vector<8x1xf32>
    %42 = vector.extract_strided_slice %1 {offsets = [6, 0], sizes = [1, 128], strides = [1, 1]} : vector<8x128xf32> to vector<1x128xf32>
    %43 = vector.broadcast %41 : vector<8x1xf32> to vector<8x128xf32>
    %44 = vector.broadcast %42 : vector<1x128xf32> to vector<8x128xf32>
    %45 = arith.mulf %43, %44 : vector<8x128xf32>
    %46 = arith.addf %40, %45 : vector<8x128xf32>
    %47 = vector.extract_strided_slice %0 {offsets = [0, 7], sizes = [8, 1], strides = [1, 1]} : vector<8x8xf32> to vector<8x1xf32>
    %48 = vector.extract_strided_slice %1 {offsets = [7, 0], sizes = [1, 128], strides = [1, 1]} : vector<8x128xf32> to vector<1x128xf32>
    %49 = vector.broadcast %47 : vector<8x1xf32> to vector<8x128xf32>
    %50 = vector.broadcast %48 : vector<1x128xf32> to vector<8x128xf32>
    %51 = arith.mulf %49, %50 : vector<8x128xf32>
    %52 = arith.addf %46, %51 : vector<8x128xf32>
    %c0_5 = arith.constant 0 : index
    %c0_6 = arith.constant 0 : index
    %53 = vector.load %arg4[%c0_5, %c0_6] : memref<8x128xf32, #tpu.memory_space<vmem>>, vector<8x128xf32>
    tpu.vector_store %arg4[%c0_5, %c0_6], %52 {strides = array<i32>} : memref<8x128xf32, #tpu.memory_space<vmem>>, vector<8x128xf32>,
    return
  }
  func.func @transform_0(%arg0: i32) -> (i32, i32) {
    %c0_i32 = arith.constant 0 : i32
    %c0_i32_0 = arith.constant 0 : i32
    return %arg0, %c0_i32 : i32, i32
  }
  func.func @transform_1(%arg0: i32) -> (i32, i32) {
    %c0_i32 = arith.constant 0 : i32
    %c0_i32_0 = arith.constant 0 : i32
    %c0_i32_1 = arith.constant 0 : i32
    return %c0_i32, %c0_i32_0 : i32, i32
  }
  func.func @transform_2(%arg0: i32) -> (i32, i32) {
    %c0_i32 = arith.constant 0 : i32
    %c0_i32_0 = arith.constant 0 : i32
    %c0_i32_1 = arith.constant 0 : i32
    return %c0_i32, %c0_i32_0 : i32, i32
  }
  func.func @transform_3(%arg0: i32) -> (i32, i32) {
    %c0_i32 = arith.constant 0 : i32
    %c0_i32_0 = arith.constant 0 : i32
    return %arg0, %c0_i32 : i32, i32
  }
}

</mosaic_0001>

<llo_original>
// kernel: tile.9
$region0: #{tile.9}
  %s0 = inlined_call_operand.vmem [shape: f32[4,32], index: 0, kind: input, shape index: {}]
  %s1 = inlined_call_operand.vmem [shape: f32[1,128], index: 1, kind: output, shape index: {}]
  $region1: #{tile.9} parent=0
    #allocation0 [shape = 'u8[4096]{0}', space=vmem, size = 0x1000, scoped, tag = 'scoped mem for output reshape']
    #allocation1 [shape = 'u8[4096]{0}', space=vmem, size = 0x1000, scoped, tag = 'scoped mem for input reshape']
    %s3 = ssub.s32 16, 1
    %v4 = vld [vmem:[%s0] sm:%s3]
    %5 = vst [vmem:[#allocation1] sm:%s3] %v4
    %v6 = vld [vmem:[#allocation1] sm:$0x1]
    %vm7 = vcmask 261120
    %8 = vst.msk [vmem:[#allocation0] sm:$0x1] %vm7, %v6
    %s9 = scalar_lea.vmem [#allocation1], 3
    %v10 = vld [vmem:[%s9] sm:$0x1]
    %11 = vrot.lane.b32.xlu0 %v10, 96
    %v12 = vpop.permute.xlu0 %11
    %vm13 = vcmask 1048320
    %14 = vst.msk [vmem:[#allocation0] sm:$0x1] %vm13, %v12
    %s15 = scalar_lea.vmem [#allocation1], 2
    %v16 = vld [vmem:[%s15] sm:$0x1]
    %17 = vrot.lane.b32.xlu0 %v16, 64
    %v18 = vpop.permute.xlu0 %17
    %vm19 = vcmask 785920
    %20 = vst.msk [vmem:[#allocation0] sm:$0x1] %vm19, %v18
    %s21 = scalar_lea.vmem [#allocation1], 1
    %v22 = vld [vmem:[%s21] sm:$0x1]
    %23 = vrot.lane.b32.xlu0 %v22, 32
    %v24 = vpop.permute.xlu0 %23
    %vm25 = vcmask 523520
    %26 = vst.msk [vmem:[#allocation0] sm:$0x1] %vm25, %v24
    %s28 = ssub.s32 2, 1
    %v29 = vld [vmem:[#allocation0] sm:%s28]
    %s31 = ssub.s32 2, 1
    %32 = vst [vmem:[%s1] sm:%s31] %v29

// kernel: tile.8
$region0: #{tile.8}
  #allocation0 [shape = 's32[1]{0}', space=sflag, size = 0x4, scoped, tag = 'scoped memory for tile.8']
  %s0 = inlined_call_operand.vmem [shape: f32[32], index: 0, kind: input, shape index: {}]
  %s1 = inlined_call_operand.vmem [shape: f32[4,32], index: 1, kind: output, shape index: {}]
  // Predicated region
  $region2: #{tile.8} parent=0 // pred_check
    _
  $region3: #{tile.8} parent=0 // pred_check_branch
    %3 = sbr.rel (0) target = $region5
  $region4: #{tile.8} parent=0 // pred_region
    _
  $region5: #{tile.8} parent=0 // pred_fallthru
    _
  %v4 = vld [vmem:[%s0] ss:$0 sm:$0xff]
  %5 = vst [vmem:[%s1] sm:$0xf] %v4

// kernel: gps_embedding_linear.1
$region0: #{gps_embedding_linear.1}
  #allocation0 [shape = 'u32[]', space=smem, size = 0x4, offset = 0x4, fixed_abs, tag = 'smem constant byte address 0x4 - core index']
  #allocation1 [shape = 'u32[72,128]{1,0:T(1,128)}', space=vmem, size = 0x9000, scoped, tag = 'internal scratch']
  %s0 = inlined_call_operand.vmem [shape: f32[8,8], index: 0, kind: input, shape index: {}]
  %s1 = inlined_call_operand.vmem [shape: f32[8,128], index: 1, kind: input, shape index: {}]
  %s2 = inlined_call_operand.vmem [shape: f32[1,128], index: 2, kind: input, shape index: {}]
  %s3 = inlined_call_operand.vmem [shape: f32[8,128], index: 3, kind: output, shape index: {}]
  %s4 = sld [smem:[#allocation0]]
  $region22: #{gps_embedding_linear.1} parent=0
    _
  %s6 = ssub.s32 1, %s4
  %s7 = scalar_select 0, %s6, %s4
  // Predicated region
  $region2: #{gps_embedding_linear.1} parent=0 // pred_check
    _
  $region3: #{gps_embedding_linear.1} parent=0 // pred_check_branch
    %9 = sbr.rel (0) target = $region5
  $region4: #{gps_embedding_linear.1} parent=0 // pred_region
    _
  $region5: #{gps_embedding_linear.1} parent=0 // pred_fallthru
    _
  // Predicated region
  $region6: #{gps_embedding_linear.1} parent=0 // pred_check
    _
  $region7: #{gps_embedding_linear.1} parent=0 // pred_check_branch
    %11 = sbr.rel (0) target = $region9
  $region8: #{gps_embedding_linear.1} parent=0 // pred_region
    _
  $region9: #{gps_embedding_linear.1} parent=0 // pred_fallthru
    _
  // Predicated region
  $region10: #{gps_embedding_linear.1} parent=0 // pred_check
    _
  $region11: #{gps_embedding_linear.1} parent=0 // pred_check_branch
    %13 = sbr.rel (0) target = $region13
  $region12: #{gps_embedding_linear.1} parent=0 // pred_region
    _
  $region13: #{gps_embedding_linear.1} parent=0 // pred_fallthru
    _
  %v14 = vld [vmem:[%s0] sm:$0xff]
  %v15 = vld [vmem:[%s1] sm:$0xff]
  %v16 = vld [vmem:[%s2] sm:$0x1]
  %v18 = vperm.slane %v16, 0
  %21 = vset.pattern.permute.xlu0 0
  %22 = vperm.xlu0 %21, %v14
  %v23 = vpop.permute.xlu0 %22
  %v25 = vperm.slane %v15, 0
  %v26 = vmul.f32 %v23, %v25
  %v27 = vadd.f32 %v18, %v26
  %28 = vset.pattern.permute.xlu0 1
  %29 = vperm.xlu0 %28, %v14
  %v30 = vpop.permute.xlu0 %29
  %v32 = vperm.slane %v15, 1
  %v33 = vmul.f32 %v30, %v32
  %v34 = vadd.f32 %v27, %v33
  %35 = vset.pattern.permute.xlu0 2
  %36 = vperm.xlu0 %35, %v14
  %v37 = vpop.permute.xlu0 %36
  %v39 = vperm.slane %v15, 2
  %v40 = vmul.f32 %v37, %v39
  %v41 = vadd.f32 %v34, %v40
  %42 = vset.pattern.permute.xlu0 3
  %43 = vperm.xlu0 %42, %v14
  %v44 = vpop.permute.xlu0 %43
  %v46 = vperm.slane %v15, 3
  %v47 = vmul.f32 %v44, %v46
  %v48 = vadd.f32 %v41, %v47
  %49 = vset.pattern.permute.xlu0 4
  %50 = vperm.xlu0 %49, %v14
  %v51 = vpop.permute.xlu0 %50
  %v53 = vperm.slane %v15, 4
  %v54 = vmul.f32 %v51, %v53
  %v55 = vadd.f32 %v48, %v54
  %56 = vset.pattern.permute.xlu0 5
  %57 = vperm.xlu0 %56, %v14
  %v58 = vpop.permute.xlu0 %57
  %v60 = vperm.slane %v15, 5
  %v61 = vmul.f32 %v58, %v60
  %v62 = vadd.f32 %v55, %v61
  %63 = vset.pattern.permute.xlu0 6
  %64 = vperm.xlu0 %63, %v14
  %v65 = vpop.permute.xlu0 %64
  %v67 = vperm.slane %v15, 6
  %v68 = vmul.f32 %v65, %v67
  %v69 = vadd.f32 %v62, %v68
  %70 = vset.pattern.permute.xlu0 7
  %71 = vperm.xlu0 %70, %v14
  %v72 = vpop.permute.xlu0 %71
  %v74 = vperm.slane %v15, 7
  %v75 = vmul.f32 %v72, %v74
  %v76 = vadd.f32 %v69, %v75
  %77 = vst [vmem:[%s3] sm:$0xff] %v76
  // Predicated region
  $region14: #{gps_embedding_linear.1} parent=0 // pred_check
    _
  $region15: #{gps_embedding_linear.1} parent=0 // pred_check_branch
    %79 = sbr.rel (0) target = $region17
  $region16: #{gps_embedding_linear.1} parent=0 // pred_region
    _
  $region17: #{gps_embedding_linear.1} parent=0 // pred_fallthru
    _
  // Predicated region
  $region18: #{gps_embedding_linear.1} parent=0 // pred_check
    _
  $region19: #{gps_embedding_linear.1} parent=0 // pred_check_branch
    %81 = sbr.rel (0) target = $region21
  $region20: #{gps_embedding_linear.1} parent=0 // pred_region
    _
  $region21: #{gps_embedding_linear.1} parent=0 // pred_fallthru
    _

</llo_original>
